<compile_context>
chip_gen: v7x
topology: tpu7x:2x2x1
jax: 0.10.0
libtpu: 0.0.40
codegen_flags: <defaults>
</compile_context>

<pallas_src>
import jax
import jax.numpy as jnp
from jax.experimental import pallas as pl
from jax.experimental.pallas import tpu as pltpu


def _fused_kernel(idx_ref, tab_ref, b_ref, scale_ref, shift_ref, out_ref):
    """One batch tile: bf16 multi-hot gather-matmul + bias + ReLU + folded BN."""
    idx = idx_ref[...]                                # (TB, num_cats) int32, offsets pre-added
    tb, num_cats = idx.shape
    total_c = tab_ref.shape[0]

    # Multi-hot in bf16: single (1, total_c) iota, per-category compares OR'ed (blocks are
    # disjoint so OR == sum), one cast at the end. Pure VPU compare work, no f32 add chain.
    iota = jax.lax.broadcasted_iota(jnp.int32, (1, total_c), 1)
    hot = idx[:, 0:1] == iota                         # (TB, total_c) bool
    for k in range(1, num_cats):                      # static tiny loop
        hot = jnp.logical_or(hot, idx[:, k:k + 1] == iota)
    multihot = hot.astype(jnp.bfloat16)

    # Single MXU matmul (bf16 x bf16 -> f32) replaces per-cat gathers + concat + Linear.
    y = jnp.dot(multihot, tab_ref[...], preferred_element_type=jnp.float32)
    y = jnp.maximum(y + b_ref[...], 0.0)              # bias + ReLU
    y = y * scale_ref[...] + shift_ref[...]           # folded BatchNorm (eval)
    out_ref[...] = y.astype(out_ref.dtype)


def prepare_multicategory(tables, w, b, gamma, beta, run_mean, run_var, eps=1e-5):
    """Fold embeddings + Linear + eval-BatchNorm into kernel-ready constants.

    Called ONCE per weight update (hoisted out of the per-forward path)."""
    num_cats = len(tables)
    emb_dim = tables[0].shape[1]
    out_features = w.shape[1]

    folded, offsets, sizes = [], [], []
    off = 0
    for k, tab in enumerate(tables):
        c_k = tab.shape[0]
        wk = w[k * emb_dim:(k + 1) * emb_dim, :].astype(jnp.float32)      # (E, F)
        tk = tab.astype(jnp.float32) @ wk                                 # (C_k, F)
        c_pad = pl.cdiv(c_k, 8) * 8                                       # sublane-align rows
        tk = jnp.pad(tk, ((0, c_pad - c_k), (0, 0)))
        folded.append(tk)
        offsets.append(off)
        sizes.append(c_k)
        off += c_pad
    fused = jnp.concatenate(folded, axis=0)
    total_c = pl.cdiv(off, 128) * 128                 # lane-align the contraction dim
    fused = jnp.pad(fused, ((0, total_c - off), (0, 0)))

    f_pad = pl.cdiv(out_features, 128) * 128          # lane-dense output stores
    pad_cols = f_pad - out_features
    fused = jnp.pad(fused, ((0, 0), (0, pad_cols))).astype(jnp.bfloat16)  # MXU-native, half VMEM

    scale = gamma.astype(jnp.float32) * jax.lax.rsqrt(run_var.astype(jnp.float32) + eps)
    shift = beta.astype(jnp.float32) - run_mean.astype(jnp.float32) * scale
    row = lambda v: jnp.pad(v.astype(jnp.float32), (0, pad_cols)).reshape(1, f_pad)

    return dict(fused_tab=fused, b_row=row(b), scale_row=row(scale), shift_row=row(shift),
                offsets=tuple(offsets), sizes=tuple(sizes), num_cats=num_cats,
                out_features=out_features, f_pad=f_pad, total_c=total_c)


def _run_pallas(idx, params, tb, b_pad, grid, single_buffer):
    total_c, f_pad, num_cats = params["total_c"], params["f_pad"], params["num_cats"]
    # Single-buffer the grid-invariant operands (constant index_map) -> no useless 2nd buffer.
    resident = dict(pipeline_mode=pl.Buffered(1)) if single_buffer else {}

    # Explicit VMEM budget: resident table (+ its buffering) + double-buffered idx/out tiles
    # + row vectors + headroom. Clamp to [32 MiB, 100 MiB].
    tab_bytes = total_c * f_pad * 2 * (1 if single_buffer else 2)
    need = (tab_bytes + 2 * (tb * num_cats * 4 + tb * f_pad * 4)
            + 6 * f_pad * 4 + (4 << 20))
    vmem_limit = int(min(max(need, 32 << 20), 100 << 20))

    return pl.pallas_call(
        _fused_kernel,
        out_shape=jax.ShapeDtypeStruct((b_pad, f_pad), jnp.float32),
        grid=grid,
        in_specs=[
            pl.BlockSpec((tb, num_cats), lambda i: (i, 0)),               # indices, batch-tiled
            pl.BlockSpec((total_c, f_pad), lambda i: (0, 0), **resident),  # folded table (bf16)
            pl.BlockSpec((1, f_pad), lambda i: (0, 0), **resident),        # bias
            pl.BlockSpec((1, f_pad), lambda i: (0, 0), **resident),        # BN scale
            pl.BlockSpec((1, f_pad), lambda i: (0, 0), **resident),        # BN shift
        ],
        out_specs=pl.BlockSpec((tb, f_pad), lambda i: (i, 0)),
        compiler_params=pltpu.CompilerParams(
            dimension_semantics=("parallel",),
            vmem_limit_bytes=vmem_limit),
    )(idx, params["fused_tab"], params["b_row"], params["scale_row"], params["shift_row"])


def multicategory_forward(cat_feats, params, block_b=512):
    """Per-call forward: pack/clamp indices, run the fused kernel, slice padding off."""
    num_cats = params["num_cats"]
    assert len(cat_feats) == num_cats
    B = cat_feats[0].shape[0]

    # Clamp (no silent bleed into neighboring category blocks) and add per-category row offsets.
    idx = jnp.stack(
        [jnp.clip(f.astype(jnp.int32), 0, params["sizes"][k] - 1) + params["offsets"][k]
         for k, f in enumerate(cat_feats)], axis=1)                       # (B, num_cats)

    # Batch tile: big (amortize per-step overhead), sublane-aligned, but near ceil(B/2) for small
    # B so the grid has >= 2 steps when possible (v7x megacore uses both TCs only then).
    tb = min(block_b, max(8, pl.cdiv(pl.cdiv(B, 2), 8) * 8))
    b_pad = pl.cdiv(B, tb) * tb
    idx = jnp.pad(idx, ((0, b_pad - B), (0, 0)))       # pad rows hit table row 0; sliced away
    grid = (b_pad // tb,)

    try:
        out = _run_pallas(idx, params, tb, b_pad, grid, single_buffer=True)
    except Exception:
        # Fallback if this jax build rejects pipeline_mode=pl.Buffered(1); identical kernel,
        # default (double-buffered) pipelining.
        out = _run_pallas(idx, params, tb, b_pad, grid, single_buffer=False)

    return out[:B, :params["out_features"]]


def multicategory_reference(cat_feats, tables, w, b, gamma, beta, run_mean, run_var, eps=1e-5):
    embs = [tab[f] for tab, f in zip(tables, cat_feats)]
    x = jnp.concatenate(embs, axis=1)
    y = jnp.maximum(x @ w + b, 0.0)
    return (y - run_mean) / jnp.sqrt(run_var + eps) * gamma + beta


if __name__ == "__main__":
    # Module config (small, deterministic, matching the PyTorch defaults).
    categories_sizes = [5, 7, 11]
    emb_dim = 32
    out_features = 64
    batch = 8
    in_features = emb_dim * len(categories_sizes)

    key = jax.random.PRNGKey(0)
    keys = jax.random.split(key, 8)

    tables = [
        jax.random.normal(jax.random.fold_in(keys[0], i), (c, emb_dim), jnp.float32)
        for i, c in enumerate(categories_sizes)
    ]
    w = jax.random.normal(keys[1], (in_features, out_features), jnp.float32) * 0.1
    b = jax.random.normal(keys[2], (out_features,), jnp.float32) * 0.1
    gamma = jnp.ones((out_features,), jnp.float32) + 0.05 * jax.random.normal(
        keys[3], (out_features,), jnp.float32)
    beta = 0.05 * jax.random.normal(keys[4], (out_features,), jnp.float32)
    run_mean = 0.1 * jax.random.normal(keys[5], (out_features,), jnp.float32)
    run_var = jnp.abs(jax.random.normal(keys[6], (out_features,), jnp.float32)) + 0.5

    cat_feats = [
        jax.random.randint(jax.random.fold_in(keys[7], i), (batch,), 0, c, jnp.int32)
        for i, c in enumerate(categories_sizes)
    ]

    # Prepare once (weight folding hoisted out of the forward path), then run the kernel.
    params = prepare_multicategory(tables, w, b, gamma, beta, run_mean, run_var)
    out = multicategory_forward(cat_feats, params)
    out = jax.block_until_ready(out)

    ref = multicategory_reference(cat_feats, tables, w, b, gamma, beta, run_mean, run_var)
    assert out.shape == (batch, out_features)
    # bf16 folded table -> ~1e-2-level relative agreement vs the f32 reference.
    assert jnp.allclose(out, ref, atol=2e-2, rtol=2e-2)

    # TODO(synk): training-mode Dropout (stochastic) and BN batch-statistics update are
    # intentionally not modeled; this kernel reproduces eval-mode forward semantics.
    print("KERNEL_OK")
</pallas_src>

<mosaic_0001>
module attributes {stable_mosaic.version = 11 : i64} {
  func.func @_fused_kernel(%arg0: i32, %arg1: memref<8x3xi32, #tpu.memory_space<vmem>>, %arg2: memref<128x128xbf16, #tpu.memory_space<vmem>>, %arg3: memref<1x128xf32, #tpu.memory_space<vmem>>, %arg4: memref<1x128xf32, #tpu.memory_space<vmem>>, %arg5: memref<1x128xf32, #tpu.memory_space<vmem>>, %arg6: memref<8x128xf32, #tpu.memory_space<vmem>>) attributes {dimension_semantics = [#tpu.dimension_semantics<parallel>], iteration_bounds = array<i64: 1>, scalar_prefetch = 0 : i64, scratch_operands = 0 : i64, tpu.core_type = #tpu.core_type<tc>, window_params = [{transform_indices = @transform_0, window_bounds = array<i64: 8, 3>}, {pipeline_mode = #tpu.pipeline_mode<synchronous>, transform_indices = @transform_1, window_bounds = array<i64: 128, 128>}, {pipeline_mode = #tpu.pipeline_mode<synchronous>, transform_indices = @transform_2, window_bounds = array<i64: 1, 128>}, {pipeline_mode = #tpu.pipeline_mode<synchronous>, transform_indices = @transform_3, window_bounds = array<i64: 1, 128>}, {pipeline_mode = #tpu.pipeline_mode<synchronous>, transform_indices = @transform_4, window_bounds = array<i64: 1, 128>}, {transform_indices = @transform_5, window_bounds = array<i64: 8, 128>}]} {
    %c0 = arith.constant 0 : index
    %c0_0 = arith.constant 0 : index
    %0 = vector.load %arg1[%c0, %c0_0] : memref<8x3xi32, #tpu.memory_space<vmem>>, vector<8x3xi32>
    %1 = tpu.iota {dimensions = array<i32: 1>} : vector<1x128xi32>
    %2 = vector.extract_strided_slice %0 {offsets = [0, 0], sizes = [8, 1], strides = [1, 1]} : vector<8x3xi32> to vector<8x1xi32>
    %3 = vector.broadcast %2 : vector<8x1xi32> to vector<8x128xi32>
    %4 = vector.broadcast %1 : vector<1x128xi32> to vector<8x128xi32>
    %5 = arith.cmpi eq, %3, %4 : vector<8x128xi32>
    %6 = vector.extract_strided_slice %0 {offsets = [0, 1], sizes = [8, 1], strides = [1, 1]} : vector<8x3xi32> to vector<8x1xi32>
    %7 = vector.broadcast %6 : vector<8x1xi32> to vector<8x128xi32>
    %8 = vector.broadcast %1 : vector<1x128xi32> to vector<8x128xi32>
    %9 = arith.cmpi eq, %7, %8 : vector<8x128xi32>
    %10 = arith.ori %5, %9 : vector<8x128xi1>
    %11 = vector.extract_strided_slice %0 {offsets = [0, 2], sizes = [8, 1], strides = [1, 1]} : vector<8x3xi32> to vector<8x1xi32>
    %12 = vector.broadcast %11 : vector<8x1xi32> to vector<8x128xi32>
    %13 = vector.broadcast %1 : vector<1x128xi32> to vector<8x128xi32>
    %14 = arith.cmpi eq, %12, %13 : vector<8x128xi32>
    %15 = arith.ori %10, %14 : vector<8x128xi1>
    %16 = arith.extui %15 : vector<8x128xi1> to vector<8x128xi32>
    %17 = arith.sitofp %16 : vector<8x128xi32> to vector<8x128xf32>
    %18 = arith.truncf %17 : vector<8x128xf32> to vector<8x128xbf16>
    %c0_1 = arith.constant 0 : index
    %c0_2 = arith.constant 0 : index
    %19 = vector.load %arg2[%c0_1, %c0_2] : memref<128x128xbf16, #tpu.memory_space<vmem>>, vector<128x128xbf16>
    %cst = arith.constant dense<0.000000e+00> : vector<8x128xf32>
    %20 = tpu.matmul %18, %19, %cst {dimension_numbers = #tpu.dot_dimension_numbers<[1], [0], [0], [1], [0, 0, 1, 1], [], []>} : vector<8x128xbf16>, vector<128x128xbf16>, vector<8x128xf32> -> vector<8x128xf32>
    %c0_3 = arith.constant 0 : index
    %c0_4 = arith.constant 0 : index
    %21 = vector.load %arg3[%c0_3, %c0_4] : memref<1x128xf32, #tpu.memory_space<vmem>>, vector<1x128xf32>
    %22 = vector.broadcast %21 : vector<1x128xf32> to vector<8x128xf32>
    %23 = arith.addf %20, %22 : vector<8x128xf32>
    %cst_5 = arith.constant 0.000000e+00 : f32
    %24 = vector.broadcast %cst_5 : f32 to vector<8x128xf32>
    %25 = arith.maximumf %23, %24 : vector<8x128xf32>
    %c0_6 = arith.constant 0 : index
    %c0_7 = arith.constant 0 : index
    %26 = vector.load %arg4[%c0_6, %c0_7] : memref<1x128xf32, #tpu.memory_space<vmem>>, vector<1x128xf32>
    %27 = vector.broadcast %26 : vector<1x128xf32> to vector<8x128xf32>
    %28 = arith.mulf %25, %27 : vector<8x128xf32>
    %c0_8 = arith.constant 0 : index
    %c0_9 = arith.constant 0 : index
    %29 = vector.load %arg5[%c0_8, %c0_9] : memref<1x128xf32, #tpu.memory_space<vmem>>, vector<1x128xf32>
    %30 = vector.broadcast %29 : vector<1x128xf32> to vector<8x128xf32>
    %31 = arith.addf %28, %30 : vector<8x128xf32>
    %c0_10 = arith.constant 0 : index
    %c0_11 = arith.constant 0 : index
    %32 = vector.load %arg6[%c0_10, %c0_11] : memref<8x128xf32, #tpu.memory_space<vmem>>, vector<8x128xf32>
    tpu.vector_store %arg6[%c0_10, %c0_11], %31 {strides = array<i32>} : memref<8x128xf32, #tpu.memory_space<vmem>>, vector<8x128xf32>,
    return
  }
  func.func @transform_0(%arg0: i32) -> (i32, i32) {
    %c0_i32 = arith.constant 0 : i32
    %c0_i32_0 = arith.constant 0 : i32
    return %arg0, %c0_i32 : i32, i32
  }
  func.func @transform_1(%arg0: i32) -> (i32, i32) {
    %c0_i32 = arith.constant 0 : i32
    %c0_i32_0 = arith.constant 0 : i32
    %c0_i32_1 = arith.constant 0 : i32
    return %c0_i32, %c0_i32_0 : i32, i32
  }
  func.func @transform_2(%arg0: i32) -> (i32, i32) {
    %c0_i32 = arith.constant 0 : i32
    %c0_i32_0 = arith.constant 0 : i32
    %c0_i32_1 = arith.constant 0 : i32
    return %c0_i32, %c0_i32_0 : i32, i32
  }
  func.func @transform_3(%arg0: i32) -> (i32, i32) {
    %c0_i32 = arith.constant 0 : i32
    %c0_i32_0 = arith.constant 0 : i32
    %c0_i32_1 = arith.constant 0 : i32
    return %c0_i32, %c0_i32_0 : i32, i32
  }
  func.func @transform_4(%arg0: i32) -> (i32, i32) {
    %c0_i32 = arith.constant 0 : i32
    %c0_i32_0 = arith.constant 0 : i32
    %c0_i32_1 = arith.constant 0 : i32
    return %c0_i32, %c0_i32_0 : i32, i32
  }
  func.func @transform_5(%arg0: i32) -> (i32, i32) {
    %c0_i32 = arith.constant 0 : i32
    %c0_i32_0 = arith.constant 0 : i32
    return %arg0, %c0_i32 : i32, i32
  }
}

module attributes {stable_mosaic.version = 11 : i64} {
  func.func @_fused_kernel(%arg0: i32, %arg1: memref<8x3xi32, #tpu.memory_space<vmem>>, %arg2: memref<128x128xbf16, #tpu.memory_space<vmem>>, %arg3: memref<1x128xf32, #tpu.memory_space<vmem>>, %arg4: memref<1x128xf32, #tpu.memory_space<vmem>>, %arg5: memref<1x128xf32, #tpu.memory_space<vmem>>, %arg6: memref<8x128xf32, #tpu.memory_space<vmem>>) attributes {dimension_semantics = [#tpu.dimension_semantics<parallel>], iteration_bounds = array<i64: 1>, scalar_prefetch = 0 : i64, scratch_operands = 0 : i64, tpu.core_type = #tpu.core_type<tc>, window_params = [{transform_indices = @transform_0, window_bounds = array<i64: 8, 3>}, {pipeline_mode = #tpu.pipeline_mode<synchronous>, transform_indices = @transform_1, window_bounds = array<i64: 128, 128>}, {pipeline_mode = #tpu.pipeline_mode<synchronous>, transform_indices = @transform_2, window_bounds = array<i64: 1, 128>}, {pipeline_mode = #tpu.pipeline_mode<synchronous>, transform_indices = @transform_3, window_bounds = array<i64: 1, 128>}, {pipeline_mode = #tpu.pipeline_mode<synchronous>, transform_indices = @transform_4, window_bounds = array<i64: 1, 128>}, {transform_indices = @transform_5, window_bounds = array<i64: 8, 128>}]} {
    %c0 = arith.constant 0 : index
    %c0_0 = arith.constant 0 : index
    %0 = vector.load %arg1[%c0, %c0_0] : memref<8x3xi32, #tpu.memory_space<vmem>>, vector<8x3xi32>
    %1 = tpu.iota {dimensions = array<i32: 1>} : vector<1x128xi32>
    %2 = vector.extract_strided_slice %0 {offsets = [0, 0], sizes = [8, 1], strides = [1, 1]} : vector<8x3xi32> to vector<8x1xi32>
    %3 = vector.broadcast %2 : vector<8x1xi32> to vector<8x128xi32>
    %4 = vector.broadcast %1 : vector<1x128xi32> to vector<8x128xi32>
    %5 = arith.cmpi eq, %3, %4 : vector<8x128xi32>
    %6 = vector.extract_strided_slice %0 {offsets = [0, 1], sizes = [8, 1], strides = [1, 1]} : vector<8x3xi32> to vector<8x1xi32>
    %7 = vector.broadcast %6 : vector<8x1xi32> to vector<8x128xi32>
    %8 = vector.broadcast %1 : vector<1x128xi32> to vector<8x128xi32>
    %9 = arith.cmpi eq, %7, %8 : vector<8x128xi32>
    %10 = arith.ori %5, %9 : vector<8x128xi1>
    %11 = vector.extract_strided_slice %0 {offsets = [0, 2], sizes = [8, 1], strides = [1, 1]} : vector<8x3xi32> to vector<8x1xi32>
    %12 = vector.broadcast %11 : vector<8x1xi32> to vector<8x128xi32>
    %13 = vector.broadcast %1 : vector<1x128xi32> to vector<8x128xi32>
    %14 = arith.cmpi eq, %12, %13 : vector<8x128xi32>
    %15 = arith.ori %10, %14 : vector<8x128xi1>
    %16 = arith.extui %15 : vector<8x128xi1> to vector<8x128xi32>
    %17 = arith.sitofp %16 : vector<8x128xi32> to vector<8x128xf32>
    %18 = arith.truncf %17 : vector<8x128xf32> to vector<8x128xbf16>
    %c0_1 = arith.constant 0 : index
    %c0_2 = arith.constant 0 : index
    %19 = vector.load %arg2[%c0_1, %c0_2] : memref<128x128xbf16, #tpu.memory_space<vmem>>, vector<128x128xbf16>
    %cst = arith.constant dense<0.000000e+00> : vector<8x128xf32>
    %20 = tpu.matmul %18, %19, %cst {dimension_numbers = #tpu.dot_dimension_numbers<[1], [0], [0], [1], [0, 0, 1, 1], [], []>} : vector<8x128xbf16>, vector<128x128xbf16>, vector<8x128xf32> -> vector<8x128xf32>
    %c0_3 = arith.constant 0 : index
    %c0_4 = arith.constant 0 : index
    %21 = vector.load %arg3[%c0_3, %c0_4] : memref<1x128xf32, #tpu.memory_space<vmem>>, vector<1x128xf32>
    %22 = vector.broadcast %21 : vector<1x128xf32> to vector<8x128xf32>
    %23 = arith.addf %20, %22 : vector<8x128xf32>
    %cst_5 = arith.constant 0.000000e+00 : f32
    %24 = vector.broadcast %cst_5 : f32 to vector<8x128xf32>
    %25 = arith.maximumf %23, %24 : vector<8x128xf32>
    %c0_6 = arith.constant 0 : index
    %c0_7 = arith.constant 0 : index
    %26 = vector.load %arg4[%c0_6, %c0_7] : memref<1x128xf32, #tpu.memory_space<vmem>>, vector<1x128xf32>
    %27 = vector.broadcast %26 : vector<1x128xf32> to vector<8x128xf32>
    %28 = arith.mulf %25, %27 : vector<8x128xf32>
    %c0_8 = arith.constant 0 : index
    %c0_9 = arith.constant 0 : index
    %29 = vector.load %arg5[%c0_8, %c0_9] : memref<1x128xf32, #tpu.memory_space<vmem>>, vector<1x128xf32>
    %30 = vector.broadcast %29 : vector<1x128xf32> to vector<8x128xf32>
    %31 = arith.addf %28, %30 : vector<8x128xf32>
    %c0_10 = arith.constant 0 : index
    %c0_11 = arith.constant 0 : index
    %32 = vector.load %arg6[%c0_10, %c0_11] : memref<8x128xf32, #tpu.memory_space<vmem>>, vector<8x128xf32>
    tpu.vector_store %arg6[%c0_10, %c0_11], %31 {strides = array<i32>} : memref<8x128xf32, #tpu.memory_space<vmem>>, vector<8x128xf32>,
    return
  }
  func.func @transform_0(%arg0: i32) -> (i32, i32) {
    %c0_i32 = arith.constant 0 : i32
    %c0_i32_0 = arith.constant 0 : i32
    return %arg0, %c0_i32 : i32, i32
  }
  func.func @transform_1(%arg0: i32) -> (i32, i32) {
    %c0_i32 = arith.constant 0 : i32
    %c0_i32_0 = arith.constant 0 : i32
    %c0_i32_1 = arith.constant 0 : i32
    return %c0_i32, %c0_i32_0 : i32, i32
  }
  func.func @transform_2(%arg0: i32) -> (i32, i32) {
    %c0_i32 = arith.constant 0 : i32
    %c0_i32_0 = arith.constant 0 : i32
    %c0_i32_1 = arith.constant 0 : i32
    return %c0_i32, %c0_i32_0 : i32, i32
  }
  func.func @transform_3(%arg0: i32) -> (i32, i32) {
    %c0_i32 = arith.constant 0 : i32
    %c0_i32_0 = arith.constant 0 : i32
    %c0_i32_1 = arith.constant 0 : i32
    return %c0_i32, %c0_i32_0 : i32, i32
  }
  func.func @transform_4(%arg0: i32) -> (i32, i32) {
    %c0_i32 = arith.constant 0 : i32
    %c0_i32_0 = arith.constant 0 : i32
    %c0_i32_1 = arith.constant 0 : i32
    return %c0_i32, %c0_i32_0 : i32, i32
  }
  func.func @transform_5(%arg0: i32) -> (i32, i32) {
    %c0_i32 = arith.constant 0 : i32
    %c0_i32_0 = arith.constant 0 : i32
    return %arg0, %c0_i32 : i32, i32
  }
}

</mosaic_0001>

<llo_original>
// kernel: tpu_custom_call.1
$region0: #{tpu_custom_call.1}
  #allocation0 [shape = 'u32[]', space=smem, size = 0x4, offset = 0x4, fixed_abs, tag = 'smem constant byte address 0x4 - core index']
  #allocation1 [shape = 'u32[144,128]{1,0:T(1,128)}', space=vmem, size = 0x12000, scoped, tag = 'internal scratch']
  %s0 = inlined_call_operand.vmem [shape: s32[8,3], index: 0, kind: input, shape index: {}]
  %s1 = inlined_call_operand.hbm [shape: bf16[128,128], index: 1, kind: input, shape index: {}]
  %s2 = inlined_call_operand.vmem [shape: f32[1,128], index: 2, kind: input, shape index: {}]
  %s3 = inlined_call_operand.vmem [shape: f32[1,128], index: 3, kind: input, shape index: {}]
  %s4 = inlined_call_operand.vmem [shape: f32[1,128], index: 4, kind: input, shape index: {}]
  %s5 = inlined_call_operand.hbm [shape: f32[8,128], index: 5, kind: output, shape index: {}]
  %s6 = sld [smem:[#allocation0]]
  $region34: #{tpu_custom_call.1} parent=0
    _
  %s8 = ssub.s32 1, %s6
  %s9 = scalar_select 0, %s8, %s6
  $region1: #{tpu_custom_call.1} parent=0
    #allocation2 [shape = 'u8[32768]{0}', space=vmem, size = 0x8000, scoped, tag = 'input window, operand 1, single buffered']
    #allocation3 [shape = 's32[1]{0}', space=sflag, size = 0x4, scoped, tag = 'scoped memory for tpu_custom_call.1']
    #allocation4 [shape = 's32[1]{0}', space=sflag, size = 0x4, scoped, tag = 'scoped memory for tpu_custom_call.1']
    #allocation5 [shape = 'u8[4096]{0}', space=vmem, size = 0x1000, scoped, tag = 'output window, operand 0, single buffered']
    %10 = vsyncpa [#allocation3], 0
    %11 = vsyncpa [#allocation4], 0
    // Predicated region
    $region2: #{tpu_custom_call.1} parent=1 // pred_check
      _
    $region3: #{tpu_custom_call.1} parent=1 // pred_check_branch
      %13 = sbr.rel (0) target = $region5
    $region4: #{tpu_custom_call.1} parent=1 // pred_region
      _
    $region5: #{tpu_custom_call.1} parent=1 // pred_fallthru
      _
    // Predicated region
    $region6: #{tpu_custom_call.1} parent=1 // pred_check
      _
    $region7: #{tpu_custom_call.1} parent=1 // pred_check_branch
      %15 = sbr.rel (0) target = $region9
    $region8: #{tpu_custom_call.1} parent=1 // pred_region
      %s17 = ssub.s32 1024, 1024
      %18 = vsyncadd [#allocation3], %s17
      %s19 = sshll.u32 [#allocation2], 4
      %s20 = int_to_ptr.vmem [resolvable:$true] %s19
      %25 = dma.hbm_to_vmem [thread:$0]  %s1, 1024, %s20, [#allocation3], 64, 64, 4
    $region9: #{tpu_custom_call.1} parent=1 // pred_fallthru
      _
    // Predicated region
    $region10: #{tpu_custom_call.1} parent=1 // pred_check
      _
    $region11: #{tpu_custom_call.1} parent=1 // pred_check_branch
      %27 = sbr.rel (0) target = $region13
    $region12: #{tpu_custom_call.1} parent=1 // pred_region
      _
    $region13: #{tpu_custom_call.1} parent=1 // pred_fallthru
      _
    // Predicated region
    $region14: #{tpu_custom_call.1} parent=1 // pred_check
      _
    $region15: #{tpu_custom_call.1} parent=1 // pred_check_branch
      %29 = sbr.rel (0) target = $region17
    $region16: #{tpu_custom_call.1} parent=1 // pred_region
      _
    $region17: #{tpu_custom_call.1} parent=1 // pred_fallthru
      _
    // Predicated region
    $region18: #{tpu_custom_call.1} parent=1 // pred_check
      _
    $region19: #{tpu_custom_call.1} parent=1 // pred_check_branch
      %31 = sbr.rel (0) target = $region21
    $region20: #{tpu_custom_call.1} parent=1 // pred_region
      _
    $region21: #{tpu_custom_call.1} parent=1 // pred_fallthru
      _
    // Predicated region
    $region22: #{tpu_custom_call.1} parent=1 // pred_check
      _
    $region23: #{tpu_custom_call.1} parent=1 // pred_check_branch
      %33 = sbr.rel (0) target = $region25
    $region24: #{tpu_custom_call.1} parent=1 // pred_region
      %34 = dma.done [#allocation3], 1024
    $region25: #{tpu_custom_call.1} parent=1 // pred_fallthru
      _
    %v36 = vld [vmem:[%s0] sm:$0xff]
    %v37 = vlaneseq
    %v38 = vand.u32 %v37, 127
    %39 = vset.pattern.permute.xlu0 0
    %40 = vperm.xlu0 %39, %v36
    %v41 = vpop.permute.xlu0 %40
    %vm42 = vcmp.eq.s32.totalorder %v41, %v38
    %43 = vset.pattern.permute.xlu0 1
    %44 = vperm.xlu0 %43, %v36
    %v45 = vpop.permute.xlu0 %44
    %vm46 = vcmp.eq.s32.totalorder %v45, %v38
    %vm47 = vmor %vm42, %vm46
    %48 = vset.pattern.permute.xlu0 2
    %49 = vperm.xlu0 %48, %v36
    %v50 = vpop.permute.xlu0 %49
    %vm51 = vcmp.eq.s32.totalorder %v50, %v38
    %vm52 = vmor %vm47, %vm51
    %v53 = vsel %vm52, 1, 0
    %v54 = vcvt.s32.f32 %v53
    %v55 = vpack.c.bf16 %v54, %v54
    %v56 = vld [vmem:[#allocation2] sm:$0xf]
    %v57 = vld [vmem:[#allocation2 + $0x4] sm:$0xf]
    %v58 = vld [vmem:[#allocation2 + $0x8] sm:$0xf]
    %v59 = vld [vmem:[#allocation2 + $0xc] sm:$0xf]
    %v60 = vld [vmem:[#allocation2 + $0x10] sm:$0xf]
    %v61 = vld [vmem:[#allocation2 + $0x14] sm:$0xf]
    %v62 = vld [vmem:[#allocation2 + $0x18] sm:$0xf]
    %v63 = vld [vmem:[#allocation2 + $0x1c] sm:$0xf]
    %v64 = vld [vmem:[#allocation2 + $0x20] sm:$0xf]
    %v65 = vld [vmem:[#allocation2 + $0x24] sm:$0xf]
    %v66 = vld [vmem:[#allocation2 + $0x28] sm:$0xf]
    %v67 = vld [vmem:[#allocation2 + $0x2c] sm:$0xf]
    %v68 = vld [vmem:[#allocation2 + $0x30] sm:$0xf]
    %v69 = vld [vmem:[#allocation2 + $0x34] sm:$0xf]
    %v70 = vld [vmem:[#allocation2 + $0x38] sm:$0xf]
    %v71 = vld [vmem:[#allocation2 + $0x3c] sm:$0xf]
    %v72 = vld [vmem:[%s2] sm:$0x1]
    %v74 = vlaneseq
    %v75 = vshrl.u32 %v74, 7
    %v76 = vsub.s32 0, %v75
    %v77 = vrot.slane %v72, %v76
    %v95 = vunpack.c.l.b16 %v56
    %v96 = vunpack.c.l.b16 %v57
    %v97 = vunpack.c.l.b16 %v58
    %v98 = vunpack.c.l.b16 %v59
    %v99 = vunpack.c.l.b16 %v60
    %v100 = vunpack.c.l.b16 %v61
    %v101 = vunpack.c.l.b16 %v62
    %v102 = vunpack.c.l.b16 %v63
    %v103 = vunpack.c.l.b16 %v64
    %v104 = vunpack.c.l.b16 %v65
    %v105 = vunpack.c.l.b16 %v66
    %v106 = vunpack.c.l.b16 %v67
    %v107 = vunpack.c.l.b16 %v68
    %v108 = vunpack.c.l.b16 %v69
    %v109 = vunpack.c.l.b16 %v70
    %v110 = vunpack.c.l.b16 %v71
    %v111 = vpack.c.b16 %v96, %v95
    %v112 = vpack.c.b16 %v98, %v97
    %v113 = vpack.c.b16 %v100, %v99
    %v114 = vpack.c.b16 %v102, %v101
    %v115 = vpack.c.b16 %v104, %v103
    %v116 = vpack.c.b16 %v106, %v105
    %v117 = vpack.c.b16 %v108, %v107
    %v118 = vpack.c.b16 %v110, %v109
    %127 = vmatprep.subr.bf16.mxu0 0
    %128 = vmatpush1.bf16.msra.mxu0 %v111
    %129 = vmatprep.subr.bf16.mxu0 0
    %130 = vmatpush1.bf16.msra.mxu0 %v112
    %131 = vmatprep.subr.bf16.mxu0 0
    %132 = vmatpush1.bf16.msra.mxu0 %v113
    %133 = vmatprep.subr.bf16.mxu0 0
    %134 = vmatpush1.bf16.msra.mxu0 %v114
    %135 = vmatprep.subr.bf16.mxu0 0
    %136 = vmatpush1.bf16.msra.mxu0 %v115
    %137 = vmatprep.subr.bf16.mxu0 0
    %138 = vmatpush1.bf16.msra.mxu0 %v116
    %139 = vmatprep.subr.bf16.mxu0 0
    %140 = vmatpush1.bf16.msra.mxu0 %v117
    %141 = vmatprep.subr.bf16.mxu0 0
    %142 = vmatpush1.bf16.msra.mxu0 %v118
    %143 = vmatprep.subr.bf16.mxu0 0
    %144 = vmatpush1.bf16.msra.mxu0 0
    %145 = vmatprep.subr.bf16.mxu0 0
    %146 = vmatpush1.bf16.msra.mxu0 0
    %147 = vmatprep.subr.bf16.mxu0 0
    %148 = vmatpush1.bf16.msra.mxu0 0
    %149 = vmatprep.subr.bf16.mxu0 0
    %150 = vmatpush1.bf16.msra.mxu0 0
    %151 = vmatprep.subr.bf16.mxu0 0
    %152 = vmatpush1.bf16.msra.mxu0 0
    %153 = vmatprep.subr.bf16.mxu0 0
    %154 = vmatpush1.bf16.msra.mxu0 0
    %155 = vmatprep.subr.bf16.mxu0 0
    %156 = vmatpush1.bf16.msra.mxu0 0
    %157 = vmatprep.subr.bf16.mxu0 0
    %158 = vmatpush1.bf16.msra.mxu0 0
    %159 = vmatprep.mubr.bf16.mxu0 0
    %160 = vmatmul.mubr.bf16.gmra.mrb[0].mxu0 %v55
    %v161 = vpop.f32.mrb[0].mxu0
    %v162 = vadd.f32 %v77, %v161
    %v163 = vpop.f32.mrb[0].mxu0
    %v164 = vpop.f32.mrb[0].mxu0
    %v165 = vpop.f32.mrb[0].mxu0
    %166 = vdwg.mxu0
    %v167 = vmax.f32 %v162, 0.0
    %v168 = vld [vmem:[%s3] sm:$0x1]
    %v170 = vlaneseq
    %v171 = vshrl.u32 %v170, 7
    %v172 = vsub.s32 0, %v171
    %v173 = vrot.slane %v168, %v172
    %v175 = vmul.f32 %v167, %v173
    %v176 = vld [vmem:[%s4] sm:$0x1]
    %v178 = vlaneseq
    %v179 = vshrl.u32 %v178, 7
    %v180 = vsub.s32 0, %v179
    %v181 = vrot.slane %v176, %v180
    %v183 = vadd.f32 %v175, %v181
    %184 = vst [vmem:[#allocation5] sm:$0xff] %v183
    // Predicated region
    $region26: #{tpu_custom_call.1} parent=1 // pred_check
      _
    $region27: #{tpu_custom_call.1} parent=1 // pred_check_branch
      %186 = sbr.rel (0) target = $region29
    $region28: #{tpu_custom_call.1} parent=1 // pred_region
      %s188 = ssub.s32 128, 128
      %189 = vsyncadd [#allocation4], %s188
      %s191 = sshll.u32 [#allocation5], 4
      %s192 = int_to_ptr.vmem [resolvable:$true] %s191
      %194 = dma.vmem_to_hbm [thread:$0]  %s192, 128, %s5, [#allocation4]
    $region29: #{tpu_custom_call.1} parent=1 // pred_fallthru
      _
    // Predicated region
    $region30: #{tpu_custom_call.1} parent=1 // pred_check
      _
    $region31: #{tpu_custom_call.1} parent=1 // pred_check_branch
      %196 = sbr.rel (0) target = $region33
    $region32: #{tpu_custom_call.1} parent=1 // pred_region
      %197 = dma.done [#allocation4], 128
    $region33: #{tpu_custom_call.1} parent=1 // pred_fallthru
      _
    %198 = vsyncpa [#allocation3], 1
    %199 = vsyncpa [#allocation4], 1

// kernel: tpu_custom_call.1
$region0: #{tpu_custom_call.1}
  #allocation0 [shape = 'u32[]', space=smem, size = 0x4, offset = 0x4, fixed_abs, tag = 'smem constant byte address 0x4 - core index']
  #allocation1 [shape = 'u32[144,128]{1,0:T(1,128)}', space=vmem, size = 0x12000, scoped, tag = 'internal scratch']
  %s0 = inlined_call_operand.vmem [shape: s32[8,3], index: 0, kind: input, shape index: {}]
  %s1 = inlined_call_operand.hbm [shape: bf16[128,128], index: 1, kind: input, shape index: {}]
  %s2 = inlined_call_operand.vmem [shape: f32[1,128], index: 2, kind: input, shape index: {}]
  %s3 = inlined_call_operand.vmem [shape: f32[1,128], index: 3, kind: input, shape index: {}]
  %s4 = inlined_call_operand.vmem [shape: f32[1,128], index: 4, kind: input, shape index: {}]
  %s5 = inlined_call_operand.hbm [shape: f32[8,128], index: 5, kind: output, shape index: {}]
  %s6 = sld [smem:[#allocation0]]
  $region34: #{tpu_custom_call.1} parent=0
    _
  %s8 = ssub.s32 1, %s6
  %s9 = scalar_select 0, %s8, %s6
  $region1: #{tpu_custom_call.1} parent=0
    #allocation2 [shape = 'u8[32768]{0}', space=vmem, size = 0x8000, scoped, tag = 'input window, operand 1, single buffered']
    #allocation3 [shape = 's32[1]{0}', space=sflag, size = 0x4, scoped, tag = 'scoped memory for tpu_custom_call.1']
    #allocation4 [shape = 's32[1]{0}', space=sflag, size = 0x4, scoped, tag = 'scoped memory for tpu_custom_call.1']
    #allocation5 [shape = 'u8[4096]{0}', space=vmem, size = 0x1000, scoped, tag = 'output window, operand 0, single buffered']
    %10 = vsyncpa [#allocation3], 0
    %11 = vsyncpa [#allocation4], 0
    // Predicated region
    $region2: #{tpu_custom_call.1} parent=1 // pred_check
      _
    $region3: #{tpu_custom_call.1} parent=1 // pred_check_branch
      %13 = sbr.rel (0) target = $region5
    $region4: #{tpu_custom_call.1} parent=1 // pred_region
      _
    $region5: #{tpu_custom_call.1} parent=1 // pred_fallthru
      _
    // Predicated region
    $region6: #{tpu_custom_call.1} parent=1 // pred_check
      _
    $region7: #{tpu_custom_call.1} parent=1 // pred_check_branch
      %15 = sbr.rel (0) target = $region9
    $region8: #{tpu_custom_call.1} parent=1 // pred_region
      %s17 = ssub.s32 1024, 1024
      %18 = vsyncadd [#allocation3], %s17
      %s19 = sshll.u32 [#allocation2], 4
      %s20 = int_to_ptr.vmem [resolvable:$true] %s19
      %25 = dma.hbm_to_vmem [thread:$0]  %s1, 1024, %s20, [#allocation3], 64, 64, 4
    $region9: #{tpu_custom_call.1} parent=1 // pred_fallthru
      _
    // Predicated region
    $region10: #{tpu_custom_call.1} parent=1 // pred_check
      _
    $region11: #{tpu_custom_call.1} parent=1 // pred_check_branch
      %27 = sbr.rel (0) target = $region13
    $region12: #{tpu_custom_call.1} parent=1 // pred_region
      _
    $region13: #{tpu_custom_call.1} parent=1 // pred_fallthru
      _
    // Predicated region
    $region14: #{tpu_custom_call.1} parent=1 // pred_check
      _
    $region15: #{tpu_custom_call.1} parent=1 // pred_check_branch
      %29 = sbr.rel (0) target = $region17
    $region16: #{tpu_custom_call.1} parent=1 // pred_region
      _
    $region17: #{tpu_custom_call.1} parent=1 // pred_fallthru
      _
    // Predicated region
    $region18: #{tpu_custom_call.1} parent=1 // pred_check
      _
    $region19: #{tpu_custom_call.1} parent=1 // pred_check_branch
      %31 = sbr.rel (0) target = $region21
    $region20: #{tpu_custom_call.1} parent=1 // pred_region
      _
    $region21: #{tpu_custom_call.1} parent=1 // pred_fallthru
      _
    // Predicated region
    $region22: #{tpu_custom_call.1} parent=1 // pred_check
      _
    $region23: #{tpu_custom_call.1} parent=1 // pred_check_branch
      %33 = sbr.rel (0) target = $region25
    $region24: #{tpu_custom_call.1} parent=1 // pred_region
      %34 = dma.done [#allocation3], 1024
    $region25: #{tpu_custom_call.1} parent=1 // pred_fallthru
      _
    %v36 = vld [vmem:[%s0] sm:$0xff]
    %v37 = vlaneseq
    %v38 = vand.u32 %v37, 127
    %39 = vset.pattern.permute.xlu0 0
    %40 = vperm.xlu0 %39, %v36
    %v41 = vpop.permute.xlu0 %40
    %vm42 = vcmp.eq.s32.totalorder %v41, %v38
    %43 = vset.pattern.permute.xlu0 1
    %44 = vperm.xlu0 %43, %v36
    %v45 = vpop.permute.xlu0 %44
    %vm46 = vcmp.eq.s32.totalorder %v45, %v38
    %vm47 = vmor %vm42, %vm46
    %48 = vset.pattern.permute.xlu0 2
    %49 = vperm.xlu0 %48, %v36
    %v50 = vpop.permute.xlu0 %49
    %vm51 = vcmp.eq.s32.totalorder %v50, %v38
    %vm52 = vmor %vm47, %vm51
    %v53 = vsel %vm52, 1, 0
    %v54 = vcvt.s32.f32 %v53
    %v55 = vpack.c.bf16 %v54, %v54
    %v56 = vld [vmem:[#allocation2] sm:$0xf]
    %v57 = vld [vmem:[#allocation2 + $0x4] sm:$0xf]
    %v58 = vld [vmem:[#allocation2 + $0x8] sm:$0xf]
    %v59 = vld [vmem:[#allocation2 + $0xc] sm:$0xf]
    %v60 = vld [vmem:[#allocation2 + $0x10] sm:$0xf]
    %v61 = vld [vmem:[#allocation2 + $0x14] sm:$0xf]
    %v62 = vld [vmem:[#allocation2 + $0x18] sm:$0xf]
    %v63 = vld [vmem:[#allocation2 + $0x1c] sm:$0xf]
    %v64 = vld [vmem:[#allocation2 + $0x20] sm:$0xf]
    %v65 = vld [vmem:[#allocation2 + $0x24] sm:$0xf]
    %v66 = vld [vmem:[#allocation2 + $0x28] sm:$0xf]
    %v67 = vld [vmem:[#allocation2 + $0x2c] sm:$0xf]
    %v68 = vld [vmem:[#allocation2 + $0x30] sm:$0xf]
    %v69 = vld [vmem:[#allocation2 + $0x34] sm:$0xf]
    %v70 = vld [vmem:[#allocation2 + $0x38] sm:$0xf]
    %v71 = vld [vmem:[#allocation2 + $0x3c] sm:$0xf]
    %v72 = vld [vmem:[%s2] sm:$0x1]
    %v74 = vlaneseq
    %v75 = vshrl.u32 %v74, 7
    %v76 = vsub.s32 0, %v75
    %v77 = vrot.slane %v72, %v76
    %v95 = vunpack.c.l.b16 %v56
    %v96 = vunpack.c.l.b16 %v57
    %v97 = vunpack.c.l.b16 %v58
    %v98 = vunpack.c.l.b16 %v59
    %v99 = vunpack.c.l.b16 %v60
    %v100 = vunpack.c.l.b16 %v61
    %v101 = vunpack.c.l.b16 %v62
    %v102 = vunpack.c.l.b16 %v63
    %v103 = vunpack.c.l.b16 %v64
    %v104 = vunpack.c.l.b16 %v65
    %v105 = vunpack.c.l.b16 %v66
    %v106 = vunpack.c.l.b16 %v67
    %v107 = vunpack.c.l.b16 %v68
    %v108 = vunpack.c.l.b16 %v69
    %v109 = vunpack.c.l.b16 %v70
    %v110 = vunpack.c.l.b16 %v71
    %v111 = vpack.c.b16 %v96, %v95
    %v112 = vpack.c.b16 %v98, %v97
    %v113 = vpack.c.b16 %v100, %v99
    %v114 = vpack.c.b16 %v102, %v101
    %v115 = vpack.c.b16 %v104, %v103
    %v116 = vpack.c.b16 %v106, %v105
    %v117 = vpack.c.b16 %v108, %v107
    %v118 = vpack.c.b16 %v110, %v109
    %127 = vmatprep.subr.bf16.mxu0 0
    %128 = vmatpush1.bf16.msra.mxu0 %v111
    %129 = vmatprep.subr.bf16.mxu0 0
    %130 = vmatpush1.bf16.msra.mxu0 %v112
    %131 = vmatprep.subr.bf16.mxu0 0
    %132 = vmatpush1.bf16.msra.mxu0 %v113
    %133 = vmatprep.subr.bf16.mxu0 0
    %134 = vmatpush1.bf16.msra.mxu0 %v114
    %135 = vmatprep.subr.bf16.mxu0 0
    %136 = vmatpush1.bf16.msra.mxu0 %v115
    %137 = vmatprep.subr.bf16.mxu0 0
    %138 = vmatpush1.bf16.msra.mxu0 %v116
    %139 = vmatprep.subr.bf16.mxu0 0
    %140 = vmatpush1.bf16.msra.mxu0 %v117
    %141 = vmatprep.subr.bf16.mxu0 0
    %142 = vmatpush1.bf16.msra.mxu0 %v118
    %143 = vmatprep.subr.bf16.mxu0 0
    %144 = vmatpush1.bf16.msra.mxu0 0
    %145 = vmatprep.subr.bf16.mxu0 0
    %146 = vmatpush1.bf16.msra.mxu0 0
    %147 = vmatprep.subr.bf16.mxu0 0
    %148 = vmatpush1.bf16.msra.mxu0 0
    %149 = vmatprep.subr.bf16.mxu0 0
    %150 = vmatpush1.bf16.msra.mxu0 0
    %151 = vmatprep.subr.bf16.mxu0 0
    %152 = vmatpush1.bf16.msra.mxu0 0
    %153 = vmatprep.subr.bf16.mxu0 0
    %154 = vmatpush1.bf16.msra.mxu0 0
    %155 = vmatprep.subr.bf16.mxu0 0
    %156 = vmatpush1.bf16.msra.mxu0 0
    %157 = vmatprep.subr.bf16.mxu0 0
    %158 = vmatpush1.bf16.msra.mxu0 0
    %159 = vmatprep.mubr.bf16.mxu0 0
    %160 = vmatmul.mubr.bf16.gmra.mrb[0].mxu0 %v55
    %v161 = vpop.f32.mrb[0].mxu0
    %v162 = vadd.f32 %v77, %v161
    %v163 = vpop.f32.mrb[0].mxu0
    %v164 = vpop.f32.mrb[0].mxu0
    %v165 = vpop.f32.mrb[0].mxu0
    %166 = vdwg.mxu0
    %v167 = vmax.f32 %v162, 0.0
    %v168 = vld [vmem:[%s3] sm:$0x1]
    %v170 = vlaneseq
    %v171 = vshrl.u32 %v170, 7
    %v172 = vsub.s32 0, %v171
    %v173 = vrot.slane %v168, %v172
    %v175 = vmul.f32 %v167, %v173
    %v176 = vld [vmem:[%s4] sm:$0x1]
    %v178 = vlaneseq
    %v179 = vshrl.u32 %v178, 7
    %v180 = vsub.s32 0, %v179
    %v181 = vrot.slane %v176, %v180
    %v183 = vadd.f32 %v175, %v181
    %184 = vst [vmem:[#allocation5] sm:$0xff] %v183
    // Predicated region
    $region26: #{tpu_custom_call.1} parent=1 // pred_check
      _
    $region27: #{tpu_custom_call.1} parent=1 // pred_check_branch
      %186 = sbr.rel (0) target = $region29
    $region28: #{tpu_custom_call.1} parent=1 // pred_region
      %s188 = ssub.s32 128, 128
      %189 = vsyncadd [#allocation4], %s188
      %s191 = sshll.u32 [#allocation5], 4
      %s192 = int_to_ptr.vmem [resolvable:$true] %s191
      %194 = dma.vmem_to_hbm [thread:$0]  %s192, 128, %s5, [#allocation4]
    $region29: #{tpu_custom_call.1} parent=1 // pred_fallthru
      _
    // Predicated region
    $region30: #{tpu_custom_call.1} parent=1 // pred_check
      _
    $region31: #{tpu_custom_call.1} parent=1 // pred_check_branch
      %196 = sbr.rel (0) target = $region33
    $region32: #{tpu_custom_call.1} parent=1 // pred_region
      %197 = dma.done [#allocation4], 128
    $region33: #{tpu_custom_call.1} parent=1 // pred_fallthru
      _
    %198 = vsyncpa [#allocation3], 1
    %199 = vsyncpa [#allocation4], 1

</llo_original>
